<compile_context>
chip_gen: v6e
topology: v6e:2x2x1
jax: 0.10.0
libtpu: 0.0.40
codegen_flags: <defaults>
</compile_context>

<pallas_src>
import jax
import jax.numpy as jnp
from jax.experimental import pallas as pl
from jax.experimental.pallas import tpu as pltpu

LANE = 128        # vreg lane width
MXU_ALIGN = 256   # v6e/v7x MXU tile width (pad hidden to this; harmless on v5e)


def _round_up(x, m):
    return (x + m - 1) // m * m


def _pick_tile_b(B, requested):
    """Multiple-of-16 batch tile; keep >= 2 grid steps when the batch allows."""
    tb = max(16, _round_up(min(requested, _round_up(B, 16)), 16))
    if B > 16 and _round_up(B, tb) // tb < 2:
        tb = max(16, _round_up(-(-B // 2), 16))   # aim for a 2-step grid (v7x megacore)
    return tb


# ---------------------------------------------------------------------------
# Pallas kernel: dense(H->H) -> tanh -> regresshead(H->1), one batch tile
# ---------------------------------------------------------------------------
def _reg_head_kernel(feat_ref, w1_ref, b1_ref, w2_ref, b2_ref, out_ref):
    # feat: [TB, Hp] bf16 (batch-tiled, double-buffered)
    # w1:   [Hp, Hp] bf16 (pre-transposed, resident, single-buffered)
    # b1:   [1, Hp]  f32  (resident)
    # w2:   [1, Hp]  f32  (resident head-weight row)
    # b2:   (1, 1)   f32  in SMEM (scalar path)
    # out:  [8, TB]  f32  lane-dense slab; row 0 carries the head output.
    h = jnp.dot(feat_ref[...], w1_ref[...], preferred_element_type=jnp.float32)
    h = jnp.tanh(h + b1_ref[...])                               # f32 bias + tanh (EUP)
    # Head (H -> 1) as VPU multiply + lane reduce; the relayout of the
    # per-row result onto lanes rides the XLU slot.
    y = jnp.sum(h * w2_ref[...], axis=-1) + b2_ref[0, 0]        # (TB,)
    out_ref[...] = jnp.broadcast_to(y.reshape(1, -1), out_ref.shape).astype(out_ref.dtype)


def regression_head(feat, w1_t, b1, w2_row, b2, *, tile_b=512):
    """feat: [B, Hp] bf16 -> [B, 1] f32 via a batch-tiled Pallas kernel."""
    B, Hp = feat.shape
    assert Hp % LANE == 0, "hidden dim must be pre-padded to a multiple of 128"
    feat = feat.astype(jnp.bfloat16)   # no-op when the encoder already emits bf16

    tb = _pick_tile_b(B, tile_b)
    Bp = _round_up(B, tb)
    if Bp != B:
        feat = jnp.pad(feat, ((0, Bp - B), (0, 0)))
    num_tiles = Bp // tb

    cost = pl.CostEstimate(
        flops=2 * Bp * Hp * Hp + 3 * Bp * Hp,
        transcendentals=Bp * Hp,
        bytes_accessed=(Bp * Hp * 2            # feat (bf16)
                        + Hp * Hp * 2          # W1 (bf16, fetched once)
                        + 2 * Hp * 4 + 4       # b1, w2 row, b2
                        + 8 * num_tiles * tb * 4),   # output slab
    )

    out = pl.pallas_call(
        _reg_head_kernel,
        out_shape=jax.ShapeDtypeStruct((8 * num_tiles, tb), jnp.float32),
        grid=(num_tiles,),
        in_specs=[
            pl.BlockSpec((tb, Hp), lambda i: (i, 0)),              # feat: tiled
            pl.BlockSpec((Hp, Hp), lambda i: (0, 0),
                         pipeline_mode=pl.Buffered(1)),            # W1: resident, 1 buf
            pl.BlockSpec((1, Hp), lambda i: (0, 0),
                         pipeline_mode=pl.Buffered(1)),            # b1: resident, 1 buf
            pl.BlockSpec((1, Hp), lambda i: (0, 0),
                         pipeline_mode=pl.Buffered(1)),            # w2: resident, 1 buf
            pl.BlockSpec(memory_space=pltpu.MemorySpace.SMEM),     # b2: scalar
        ],
        out_specs=pl.BlockSpec((8, tb), lambda i: (i, 0)),
        compiler_params=pltpu.CompilerParams(
            dimension_semantics=("parallel",),   # megacore-shard batch on v7x
        ),
        cost_estimate=cost,
    )(feat, w1_t, b1, w2_row, b2)

    # Row 0 of each (8, tb) slab holds the payload.
    y = out.reshape(num_tiles, 8, tb)[:, 0, :].reshape(Bp)[:B]
    return y[:, None]


# ---------------------------------------------------------------------------
# Plain-JAX glue: stub text encoder + deterministic parameter init
# ---------------------------------------------------------------------------
def text_encoder_stub(token_ids, embedding_table):
    # TODO(synk): the real TextEncoder is a Roberta model; stubbed here as
    # embedding lookup + mean pool over the sequence dim (plain JAX/XLA).
    emb = embedding_table[token_ids]                   # [B, S, Hp] f32
    return jnp.mean(emb, axis=1).astype(jnp.bfloat16)  # [B, Hp] bf16 (cast fuses)


def xavier_uniform(key, fan_in, fan_out, shape):
    limit = jnp.sqrt(6.0 / (fan_in + fan_out))
    return jax.random.uniform(key, shape, jnp.float32, -limit, limit)


def make_params(key, hidden_size, vocab_size):
    """Params in kernel layout: pre-transposed, MXU-aligned padding, W1 in bf16."""
    hp = _round_up(hidden_size, MXU_ALIGN)
    k_emb, k_dense_w, k_dense_b, k_reg_w = jax.random.split(key, 4)

    # Embedding table padded to hp lanes (padding columns are zero), so the
    # encoder features come out lane-aligned with no per-forward padding.
    emb = jnp.zeros((vocab_size, hp), jnp.float32)
    emb = emb.at[:, :hidden_size].set(
        jax.random.normal(k_emb, (vocab_size, hidden_size), jnp.float32) * 0.02)

    # self.dense = nn.Linear(H, H): stored pre-transposed [in, out], padded to
    # [hp, hp], cast to bf16 once here (kernel accumulates in f32).
    dense_w_t = jnp.zeros((hp, hp), jnp.float32)
    dense_w_t = dense_w_t.at[:hidden_size, :hidden_size].set(
        xavier_uniform(k_dense_w, hidden_size, hidden_size,
                       (hidden_size, hidden_size)))
    dense_w_t = dense_w_t.astype(jnp.bfloat16)

    dense_b = jnp.zeros((1, hp), jnp.float32)
    dense_b = dense_b.at[0, :hidden_size].set(
        jax.random.normal(k_dense_b, (hidden_size,), jnp.float32) * 0.01)

    # self.regresshead = nn.Linear(H, 1): xavier_uniform weight, zero bias.
    # Stored as a [1, hp] row for the VPU-reduction head (padding lanes zero,
    # and tanh(0)=0 on padded hidden lanes, so padding never contributes).
    reg_w_row = jnp.zeros((1, hp), jnp.float32)
    reg_w_row = reg_w_row.at[0, :hidden_size].set(
        xavier_uniform(k_reg_w, hidden_size, 1, (1, hidden_size))[0])
    reg_b = jnp.zeros((1, 1), jnp.float32)

    return emb, dense_w_t, dense_b, reg_w_row, reg_b


def regression_model2_forward(token_ids, params, *, tile_b=512):
    emb, w1_t, b1, w2_row, b2 = params
    feat = text_encoder_stub(token_ids, emb)                   # [B, Hp] bf16
    return regression_head(feat, w1_t, b1, w2_row, b2, tile_b=tile_b)  # [B, 1]


if __name__ == "__main__":
    key = jax.random.PRNGKey(0)
    k_params, k_tok = jax.random.split(key)

    batch = 32
    seq = 8
    hidden = 32        # config['RobertaConfig']['hidden_size'] (small synthetic)
    vocab = 64

    params = make_params(k_params, hidden, vocab)
    token_ids = jax.random.randint(k_tok, (batch, seq), 0, vocab)

    # default tile_b -> tile 16, grid=(2,): exercises batch tiling / pipelining
    # and the >=2-step megacore clamp even at toy size.
    out = regression_model2_forward(token_ids, params)
    out = jax.block_until_ready(out)
    assert out.shape == (batch, 1)

    # Reference in plain JAX (f32 math on the same bf16 features/weights):
    # Linear -> Tanh -> Linear.
    emb, w1_t, b1, w2_row, b2 = params
    feat = text_encoder_stub(token_ids, emb).astype(jnp.float32)
    ref = jnp.tanh(feat @ w1_t.astype(jnp.float32) + b1) @ w2_row.T + b2
    assert jnp.allclose(out, ref, atol=1e-2, rtol=1e-2), "mismatch vs. reference"

    print("KERNEL_OK")
</pallas_src>

<mosaic_0001>
module attributes {stable_mosaic.version = 11 : i64} {
  func.func @_reg_head_kernel(%arg0: i32, %arg1: memref<16x256xbf16, #tpu.memory_space<vmem>>, %arg2: memref<256x256xbf16, #tpu.memory_space<vmem>>, %arg3: memref<1x256xf32, #tpu.memory_space<vmem>>, %arg4: memref<1x256xf32, #tpu.memory_space<vmem>>, %arg5: memref<1x1xf32, #tpu.memory_space<smem>>, %arg6: memref<8x16xf32, #tpu.memory_space<vmem>>) attributes {dimension_semantics = [#tpu.dimension_semantics<parallel>], iteration_bounds = array<i64: 2>, scalar_prefetch = 0 : i64, scratch_operands = 0 : i64, tpu.core_type = #tpu.core_type<tc>, window_params = [{transform_indices = @transform_0, window_bounds = array<i64: 16, 256>}, {pipeline_mode = #tpu.pipeline_mode<synchronous>, transform_indices = @transform_1, window_bounds = array<i64: 256, 256>}, {pipeline_mode = #tpu.pipeline_mode<synchronous>, transform_indices = @transform_2, window_bounds = array<i64: 1, 256>}, {pipeline_mode = #tpu.pipeline_mode<synchronous>, transform_indices = @transform_3, window_bounds = array<i64: 1, 256>}, {transform_indices = @transform_4, window_bounds = array<i64: 1, 1>}, {transform_indices = @transform_5, window_bounds = array<i64: 8, 16>}]} {
    %c0 = arith.constant 0 : index
    %c0_0 = arith.constant 0 : index
    %0 = vector.load %arg1[%c0, %c0_0] : memref<16x256xbf16, #tpu.memory_space<vmem>>, vector<16x256xbf16>
    %c0_1 = arith.constant 0 : index
    %c0_2 = arith.constant 0 : index
    %1 = vector.load %arg2[%c0_1, %c0_2] : memref<256x256xbf16, #tpu.memory_space<vmem>>, vector<256x256xbf16>
    %cst = arith.constant dense<0.000000e+00> : vector<16x256xf32>
    %2 = tpu.matmul %0, %1, %cst {dimension_numbers = #tpu.dot_dimension_numbers<[1], [0], [0], [1], [0, 0, 1, 1], [], []>} : vector<16x256xbf16>, vector<256x256xbf16>, vector<16x256xf32> -> vector<16x256xf32>
    %c0_3 = arith.constant 0 : index
    %c0_4 = arith.constant 0 : index
    %3 = vector.load %arg3[%c0_3, %c0_4] : memref<1x256xf32, #tpu.memory_space<vmem>>, vector<1x256xf32>
    %4 = vector.broadcast %3 : vector<1x256xf32> to vector<16x256xf32>
    %5 = arith.addf %2, %4 : vector<16x256xf32>
    %6 = math.tanh %5 : vector<16x256xf32>
    %c0_5 = arith.constant 0 : index
    %c0_6 = arith.constant 0 : index
    %7 = vector.load %arg4[%c0_5, %c0_6] : memref<1x256xf32, #tpu.memory_space<vmem>>, vector<1x256xf32>
    %8 = vector.broadcast %7 : vector<1x256xf32> to vector<16x256xf32>
    %9 = arith.mulf %6, %8 : vector<16x256xf32>
    %cst_7 = arith.constant dense<0.000000e+00> : vector<16xf32>
    %10 = vector.multi_reduction <add>, %9, %cst_7 [1] : vector<16x256xf32> to vector<16xf32>
    %c0_8 = arith.constant 0 : index
    %c0_9 = arith.constant 0 : index
    %11 = memref.load %arg5[%c0_8, %c0_9] : memref<1x1xf32, #tpu.memory_space<smem>>
    %12 = vector.broadcast %11 : f32 to vector<16xf32>
    %13 = arith.addf %10, %12 : vector<16xf32>
    %14 = vector.shape_cast %13 : vector<16xf32> to vector<1x16xf32>
    %15 = vector.shape_cast %14 : vector<1x16xf32> to vector<1x16xf32>
    %16 = vector.broadcast %15 : vector<1x16xf32> to vector<8x16xf32>
    %c0_10 = arith.constant 0 : index
    %c0_11 = arith.constant 0 : index
    %17 = vector.load %arg6[%c0_10, %c0_11] : memref<8x16xf32, #tpu.memory_space<vmem>>, vector<8x16xf32>
    tpu.vector_store %arg6[%c0_10, %c0_11], %16 {strides = array<i32>} : memref<8x16xf32, #tpu.memory_space<vmem>>, vector<8x16xf32>,
    return
  }
  func.func @transform_0(%arg0: i32) -> (i32, i32) {
    %c0_i32 = arith.constant 0 : i32
    %c0_i32_0 = arith.constant 0 : i32
    return %arg0, %c0_i32 : i32, i32
  }
  func.func @transform_1(%arg0: i32) -> (i32, i32) {
    %c0_i32 = arith.constant 0 : i32
    %c0_i32_0 = arith.constant 0 : i32
    %c0_i32_1 = arith.constant 0 : i32
    return %c0_i32, %c0_i32_0 : i32, i32
  }
  func.func @transform_2(%arg0: i32) -> (i32, i32) {
    %c0_i32 = arith.constant 0 : i32
    %c0_i32_0 = arith.constant 0 : i32
    %c0_i32_1 = arith.constant 0 : i32
    return %c0_i32, %c0_i32_0 : i32, i32
  }
  func.func @transform_3(%arg0: i32) -> (i32, i32) {
    %c0_i32 = arith.constant 0 : i32
    %c0_i32_0 = arith.constant 0 : i32
    %c0_i32_1 = arith.constant 0 : i32
    return %c0_i32, %c0_i32_0 : i32, i32
  }
  func.func @transform_4(%arg0: i32) -> (i32, i32) {
    %c0_i32 = arith.constant 0 : i32
    %c0_i32_0 = arith.constant 0 : i32
    %c0_i32_1 = arith.constant 0 : i32
    return %c0_i32, %c0_i32_0 : i32, i32
  }
  func.func @transform_5(%arg0: i32) -> (i32, i32) {
    %c0_i32 = arith.constant 0 : i32
    %c0_i32_0 = arith.constant 0 : i32
    return %arg0, %c0_i32 : i32, i32
  }
}

</mosaic_0001>

<llo_original>
// kernel: tpu_custom_call.1
$region0: #{tpu_custom_call.1}
  #allocation0 [shape = 'u32[]', space=smem, size = 0x4, offset = 0x4, fixed_abs, tag = 'smem constant byte address 0x4 - core index']
  #allocation1 [shape = 'u32[144,128]{1,0:T(1,128)}', space=vmem, size = 0x12000, scoped, tag = 'internal scratch']
  #allocation2 [shape = 'f32[1,1]{1,0:T(1,128)S(6)}', space=smem, size = 0x200, scoped, tag = 'scoped memory for tpu_custom_call.1']
  %s0 = inlined_call_operand.hbm [shape: bf16[32,256], index: 0, kind: input, shape index: {}]
  %s1 = inlined_call_operand.hbm [shape: bf16[256,256], index: 1, kind: input, shape index: {}]
  %s2 = inlined_call_operand.vmem [shape: f32[1,256], index: 2, kind: input, shape index: {}]
  %s3 = inlined_call_operand.vmem [shape: f32[1,256], index: 3, kind: input, shape index: {}]
  %s4 = inlined_call_operand.<no memory space> [shape: f32[1,1], index: 4, kind: input, shape index: {}]
  %s5 = inlined_call_operand.hbm [shape: f32[16,16], index: 5, kind: output, shape index: {}]
  %s6 = sld [smem:[#allocation0]]
  $region61: #{tpu_custom_call.1} parent=0
    _
  %s8 = ssub.s32 1, %s6
  %s9 = scalar_select 0, %s8, %s6
  %10 = sst [smem:[#allocation2]] %s4
  $region1: #{tpu_custom_call.1} parent=0
    #allocation3 [shape = 'u8[16384]{0}', space=vmem, size = 0x4000, scoped, tag = 'input window, operand 0']
    #allocation4 [shape = 's32[2]{0}', space=sflag, size = 0x8, scoped, tag = 'scoped memory for tpu_custom_call.1']
    #allocation5 [shape = 's32[2]{0}', space=sflag, size = 0x8, scoped, tag = 'scoped memory for tpu_custom_call.1']
    #allocation6 [shape = 'u8[131072]{0}', space=vmem, size = 0x20000, scoped, tag = 'input window, operand 1, single buffered']
    #allocation7 [shape = 's32[1]{0}', space=sflag, size = 0x4, scoped, tag = 'scoped memory for tpu_custom_call.1']
    #allocation8 [shape = 'u8[8192]{0}', space=vmem, size = 0x2000, scoped, tag = 'output window, operand 0']
    %11 = vsyncpa [#allocation4], 0
    %s12 = scalar_lea.sflag [#allocation4], 1
    %13 = vsyncpa %s12, 0
    %14 = vsyncpa [#allocation7], 0
    %15 = vsyncpa [#allocation5], 0
    %s16 = scalar_lea.sflag [#allocation5], 1
    %17 = vsyncpa %s16, 0
    loop: start=0, step=1, limit=4
    $region2: #{tpu_custom_call.1} parent=1 // loop_pre_header
      _
    $region3: #{tpu_custom_call.1} parent=1 // loop_header
      %s19 = sphi 0, %s23
      %p20 = scmp.ge.s32.totalorder %s19, 4
      %s29 = sphi 0, %s31
      %s32 = sphi 0, %s29
      %s33 = sphi 0, %s32
      %s49 = sphi 0, %s33
      %s53 = sphi 0, %s53
      %s55 = sphi 0, %s53
      %s56 = sphi 0, %s55
      %s70 = sphi 0, %s56
      %s74 = sphi 0, %s74
      %s76 = sphi 0, %s74
      %s77 = sphi 0, %s76
      %s91 = sphi 0, %s77
      %s95 = sphi 0, %s95
      %s97 = sphi 0, %s95
      %s98 = sphi 0, %s97
      %s112 = sphi 0, %s98
      %s116 = sphi 0, %s116
      %s118 = sphi 0, %s116
      %s119 = sphi 0, %s118
      %s133 = sphi 0, %s119
      %s139 = sphi 0, %s141
      %s142 = sphi 0, %s139
      %s143 = sphi 0, %s142
      %s159 = sphi 0, %s143
    $region4: #{tpu_custom_call.1} parent=1 // loop_header_branch
      %22 = sbr.rel (%p20) target = $region8
    $region5: #{tpu_custom_call.1} parent=1 // loop_body
      %s24 = ssub.s32 %s19, 1
      %s25 = ssub.s32 %s19, 2
      %s26 = sadd.s32 %s19, 1
      %s27 = ssub.s32 %s19, %s26
      %p28 = scmp.eq.s32.totalorder %s27, 0
      %s30 = sadd.s32 %s29, 1
      %s31 = scalar_select %p28, %s29, %s30
      %p34 = pneg %p28
      %p35 = scmp.eq.s32.totalorder %s19, 1
      %p36 = por %p34, %p35
      %p37 = scmp.ne.s32.totalorder %s29, %s32
      %p38 = scmp.eq.s32.totalorder %s19, 0
      %p39 = por %p37, %p38
      %p40 = scmp.ne.s32.totalorder %s29, %s32
      %p41 = scmp.eq.s32.totalorder %s24, 1
      %p42 = por %p40, %p41
      %p43 = scmp.ne.s32.totalorder %s32, %s33
      %p44 = scmp.eq.s32.totalorder %s24, 0
      %p45 = por %p43, %p44
      %p46 = scmp.ne.s32.totalorder %s32, %s33
      %p47 = scmp.eq.s32.totalorder %s25, 1
      %p48 = por %p46, %p47
      %p50 = scmp.ne.s32.totalorder %s33, %s49
      %p51 = scmp.eq.s32.totalorder %s25, 0
      %p52 = por %p50, %p51
      %s54 = sadd.s32 %s53, 1
      %p57 = scmp.eq.s32.totalorder %s19, 1
      %p58 = scmp.ne.s32.totalorder %s53, %s55
      %p59 = scmp.eq.s32.totalorder %s19, 0
      %p60 = por %p58, %p59
      %p61 = scmp.ne.s32.totalorder %s53, %s55
      %p62 = scmp.eq.s32.totalorder %s24, 1
      %p63 = por %p61, %p62
      %p64 = scmp.ne.s32.totalorder %s55, %s56
      %p65 = scmp.eq.s32.totalorder %s24, 0
      %p66 = por %p64, %p65
      %p67 = scmp.ne.s32.totalorder %s55, %s56
      %p68 = scmp.eq.s32.totalorder %s25, 1
      %p69 = por %p67, %p68
      %p71 = scmp.ne.s32.totalorder %s56, %s70
      %p72 = scmp.eq.s32.totalorder %s25, 0
      %p73 = por %p71, %p72
      %s75 = sadd.s32 %s74, 1
      %p78 = scmp.eq.s32.totalorder %s19, 1
      %p79 = scmp.ne.s32.totalorder %s74, %s76
      %p80 = scmp.eq.s32.totalorder %s19, 0
      %p81 = por %p79, %p80
      %p82 = scmp.ne.s32.totalorder %s74, %s76
      %p83 = scmp.eq.s32.totalorder %s24, 1
      %p84 = por %p82, %p83
      %p85 = scmp.ne.s32.totalorder %s76, %s77
      %p86 = scmp.eq.s32.totalorder %s24, 0
      %p87 = por %p85, %p86
      %p88 = scmp.ne.s32.totalorder %s76, %s77
      %p89 = scmp.eq.s32.totalorder %s25, 1
      %p90 = por %p88, %p89
      %p92 = scmp.ne.s32.totalorder %s77, %s91
      %p93 = scmp.eq.s32.totalorder %s25, 0
      %p94 = por %p92, %p93
      %s96 = sadd.s32 %s95, 1
      %p99 = scmp.eq.s32.totalorder %s19, 1
      %p100 = scmp.ne.s32.totalorder %s95, %s97
      %p101 = scmp.eq.s32.totalorder %s19, 0
      %p102 = por %p100, %p101
      %p103 = scmp.ne.s32.totalorder %s95, %s97
      %p104 = scmp.eq.s32.totalorder %s24, 1
      %p105 = por %p103, %p104
      %p106 = scmp.ne.s32.totalorder %s97, %s98
      %p107 = scmp.eq.s32.totalorder %s24, 0
      %p108 = por %p106, %p107
      %p109 = scmp.ne.s32.totalorder %s97, %s98
      %p110 = scmp.eq.s32.totalorder %s25, 1
      %p111 = por %p109, %p110
      %p113 = scmp.ne.s32.totalorder %s98, %s112
      %p114 = scmp.eq.s32.totalorder %s25, 0
      %p115 = por %p113, %p114
      %s117 = sadd.s32 %s116, 1
      %p120 = scmp.eq.s32.totalorder %s19, 1
      %p121 = scmp.ne.s32.totalorder %s116, %s118
      %p122 = scmp.eq.s32.totalorder %s19, 0
      %p123 = por %p121, %p122
      %p124 = scmp.ne.s32.totalorder %s116, %s118
      %p125 = scmp.eq.s32.totalorder %s24, 1
      %p126 = por %p124, %p125
      %p127 = scmp.ne.s32.totalorder %s118, %s119
      %p128 = scmp.eq.s32.totalorder %s24, 0
      %p129 = por %p127, %p128
      %p130 = scmp.ne.s32.totalorder %s118, %s119
      %p131 = scmp.eq.s32.totalorder %s25, 1
      %p132 = por %p130, %p131
      %p134 = scmp.ne.s32.totalorder %s119, %s133
      %p135 = scmp.eq.s32.totalorder %s25, 0
      %p136 = por %p134, %p135
      %s137 = ssub.s32 %s19, %s26
      %p138 = scmp.eq.s32.totalorder %s137, 0
      %s140 = sadd.s32 %s139, 1
      %s141 = scalar_select %p138, %s139, %s140
      %p144 = pneg %p138
      %p145 = scmp.eq.s32.totalorder %s19, 1
      %p146 = por %p144, %p145
      %p147 = scmp.ne.s32.totalorder %s139, %s142
      %p148 = scmp.eq.s32.totalorder %s19, 0
      %p149 = por %p147, %p148
      %p150 = scmp.ne.s32.totalorder %s139, %s142
      %p151 = scmp.eq.s32.totalorder %s24, 1
      %p152 = por %p150, %p151
      %p153 = scmp.ne.s32.totalorder %s142, %s143
      %p154 = scmp.eq.s32.totalorder %s24, 0
      %p155 = por %p153, %p154
      %p156 = scmp.ne.s32.totalorder %s142, %s143
      %p157 = scmp.eq.s32.totalorder %s25, 1
      %p158 = por %p156, %p157
      %p160 = scmp.ne.s32.totalorder %s143, %s159
      %p161 = scmp.eq.s32.totalorder %s25, 0
      %p162 = por %p160, %p161
      %p163 = scmp.le.s32.totalorder 1, %s19
      %p164 = scmp.lt.s32.totalorder %s19, 3
      %p165 = pnand %p163, %p164
      %p166 = pneg %p165
      // Predicated region
      $region9: #{tpu_custom_call.1} parent=5 // pred_check
        _
      $region10: #{tpu_custom_call.1} parent=5 // pred_check_branch
        %168 = sbr.rel (%p165) target = $region12
      $region11: #{tpu_custom_call.1} parent=5 // pred_region
        %s169 = ssub.s32 %s19, 1
        // Predicated region
        $region13: #{tpu_custom_call.1} parent=11 // pred_check
          %p170 = pneg %p66
        $region14: #{tpu_custom_call.1} parent=11 // pred_check_branch
          %172 = sbr.rel (%p170) target = $region16
        $region15: #{tpu_custom_call.1} parent=11 // pred_region
          %s174 = ssub.s32 4096, 4096
          %175 = vsyncadd [#allocation7], %s174
          %s176 = sshll.u32 [#allocation6], 4
          %s177 = int_to_ptr.vmem [resolvable:$true] %s176
          %182 = dma.hbm_to_vmem [thread:$0]  %s1, 4096, %s177, [#allocation7], 128, 128, 8
        $region16: #{tpu_custom_call.1} parent=11 // pred_fallthru
          _
        // Predicated region
        $region17: #{tpu_custom_call.1} parent=11 // pred_check
          %p183 = pneg %p87
        $region18: #{tpu_custom_call.1} parent=11 // pred_check_branch
          %185 = sbr.rel (%p183) target = $region20
        $region19: #{tpu_custom_call.1} parent=11 // pred_region
          _
        $region20: #{tpu_custom_call.1} parent=11 // pred_fallthru
          _
        // Predicated region
        $region21: #{tpu_custom_call.1} parent=11 // pred_check
          %p186 = pneg %p108
        $region22: #{tpu_custom_call.1} parent=11 // pred_check_branch
          %188 = sbr.rel (%p186) target = $region24
        $region23: #{tpu_custom_call.1} parent=11 // pred_region
          _
        $region24: #{tpu_custom_call.1} parent=11 // pred_fallthru
          _
        // Predicated region
        $region25: #{tpu_custom_call.1} parent=11 // pred_check
          %p189 = pneg %p129
        $region26: #{tpu_custom_call.1} parent=11 // pred_check_branch
          %191 = sbr.rel (%p189) target = $region28
        $region27: #{tpu_custom_call.1} parent=11 // pred_region
          _
        $region28: #{tpu_custom_call.1} parent=11 // pred_fallthru
          _
      $region12: #{tpu_custom_call.1} parent=5 // pred_fallthru
        _
      %p192 = scmp.lt.s32.totalorder %s19, 2
      // Predicated region
      $region29: #{tpu_custom_call.1} parent=5 // pred_check
        %p193 = pneg %p192
      $region30: #{tpu_custom_call.1} parent=5 // pred_check_branch
        %195 = sbr.rel (%p193) target = $region32
      $region31: #{tpu_custom_call.1} parent=5 // pred_region
        // Predicated region
        $region33: #{tpu_custom_call.1} parent=31 // pred_check
          %p196 = pneg %p39
        $region34: #{tpu_custom_call.1} parent=31 // pred_check_branch
          %198 = sbr.rel (%p196) target = $region36
        $region35: #{tpu_custom_call.1} parent=31 // pred_region
          %s199 = sand.u32 %s29, 1
          %s200 = scalar_lea.sflag [#allocation4], %s199
          %s201 = sand.u32 %s29, 1
          %s202 = smul.addr %s201, 16
          %s203 = scalar_lea.vmem [#allocation3], %s202
          %s204 = smul.u32 2, %s19
          %s206 = ssub.s32 256, 256
          %207 = vsyncadd %s200, %s206
          %s208 = smul.addr %s204, 2
          %s209 = smul.addr %s208, 64
          %s210 = scalar_lea.hbm %s0, %s209
          %s211 = sshll.u32 %s203, 4
          %s212 = int_to_ptr.vmem [resolvable:$true] %s211
          %217 = dma.hbm_to_vmem [thread:$0]  %s210, 256, %s212, %s200, 128, 128, 8
        $region36: #{tpu_custom_call.1} parent=31 // pred_fallthru
          _
      $region32: #{tpu_custom_call.1} parent=5 // pred_fallthru
        _
      %p218 = scmp.le.s32.totalorder 1, %s19
      %p219 = scmp.lt.s32.totalorder %s19, 3
      %p220 = pnand %p218, %p219
      %p221 = pneg %p220
      // Predicated region
      $region37: #{tpu_custom_call.1} parent=5 // pred_check
        _
      $region38: #{tpu_custom_call.1} parent=5 // pred_check_branch
        %223 = sbr.rel (%p220) target = $region40
      $region39: #{tpu_custom_call.1} parent=5 // pred_region
        %s224 = ssub.s32 %s19, 1
        %s225 = sand.u32 %s32, 1
        %s226 = scalar_lea.sflag [#allocation4], %s225
        %s227 = sand.u32 %s32, 1
        %s228 = smul.addr %s227, 16
        %s229 = scalar_lea.vmem [#allocation3], %s228
        // Predicated region
        $region41: #{tpu_custom_call.1} parent=39 // pred_check
          %p230 = pneg %p45
        $region42: #{tpu_custom_call.1} parent=39 // pred_check_branch
          %232 = sbr.rel (%p230) target = $region44
        $region43: #{tpu_custom_call.1} parent=39 // pred_region
          %233 = dma.done %s226, 256
        $region44: #{tpu_custom_call.1} parent=39 // pred_fallthru
          _
        // Predicated region
        $region45: #{tpu_custom_call.1} parent=39 // pred_check
          %p234 = pneg %p66
        $region46: #{tpu_custom_call.1} parent=39 // pred_check_branch
          %236 = sbr.rel (%p234) target = $region48
        $region47: #{tpu_custom_call.1} parent=39 // pred_region
          %237 = dma.done [#allocation7], 4096
        $region48: #{tpu_custom_call.1} parent=39 // pred_fallthru
          _
        %s238 = sand.u32 %s32, 1
        %s239 = scalar_lea.sflag [#allocation4], %s238
        %s240 = sand.u32 %s32, 1
        %s241 = smul.addr %s240, 16
        %s242 = scalar_lea.vmem [#allocation3], %s241
        %p243 = pneg %p45
        %p244 = pneg %p42
        %p245 = pneg %p66
        %p246 = pneg %p63
        %p247 = pneg %p87
        %p248 = pneg %p84
        %p249 = pneg %p108
        %p250 = pneg %p105
        %p251 = pneg %p129
        %p252 = pneg %p126
        %p253 = pneg %p155
        %p254 = pneg %p152
        %s255 = sand.u32 %s142, 1
        %s256 = scalar_lea.sflag [#allocation5], %s255
        %s257 = sand.u32 %s142, 1
        %s258 = smul.addr %s257, 8
        %s259 = scalar_lea.vmem [#allocation8], %s258
        %s260 = smul.u32 2, %s24
        %v261 = vld [vmem:[%s229] sm:$0xff]
        %v262 = vld [vmem:[%s229 + $0x8] sm:$0xff]
        %v263 = vld [vmem:[#allocation6] sm:$0xff]
        %v264 = vld [vmem:[#allocation6 + $0x8] sm:$0xff]
        %v265 = vld [vmem:[#allocation6 + $0x10] sm:$0xff]
        %v266 = vld [vmem:[#allocation6 + $0x18] sm:$0xff]
        %v267 = vld [vmem:[#allocation6 + $0x20] sm:$0xff]
        %v268 = vld [vmem:[#allocation6 + $0x28] sm:$0xff]
        %v269 = vld [vmem:[#allocation6 + $0x30] sm:$0xff]
        %v270 = vld [vmem:[#allocation6 + $0x38] sm:$0xff]
        %v271 = vld [vmem:[#allocation6 + $0x40] sm:$0xff]
        %v272 = vld [vmem:[#allocation6 + $0x48] sm:$0xff]
        %v273 = vld [vmem:[#allocation6 + $0x50] sm:$0xff]
        %v274 = vld [vmem:[#allocation6 + $0x58] sm:$0xff]
        %v275 = vld [vmem:[#allocation6 + $0x60] sm:$0xff]
        %v276 = vld [vmem:[#allocation6 + $0x68] sm:$0xff]
        %v277 = vld [vmem:[#allocation6 + $0x70] sm:$0xff]
        %v278 = vld [vmem:[#allocation6 + $0x78] sm:$0xff]
        %v279 = vld [vmem:[#allocation6 + $0x80] sm:$0xff]
        %v280 = vld [vmem:[#allocation6 + $0x88] sm:$0xff]
        %v281 = vld [vmem:[#allocation6 + $0x90] sm:$0xff]
        %v282 = vld [vmem:[#allocation6 + $0x98] sm:$0xff]
        %v283 = vld [vmem:[#allocation6 + $0xa0] sm:$0xff]
        %v284 = vld [vmem:[#allocation6 + $0xa8] sm:$0xff]
        %v285 = vld [vmem:[#allocation6 + $0xb0] sm:$0xff]
        %v286 = vld [vmem:[#allocation6 + $0xb8] sm:$0xff]
        %v287 = vld [vmem:[#allocation6 + $0xc0] sm:$0xff]
        %v288 = vld [vmem:[#allocation6 + $0xc8] sm:$0xff]
        %v289 = vld [vmem:[#allocation6 + $0xd0] sm:$0xff]
        %v290 = vld [vmem:[#allocation6 + $0xd8] sm:$0xff]
        %v291 = vld [vmem:[#allocation6 + $0xe0] sm:$0xff]
        %v292 = vld [vmem:[#allocation6 + $0xe8] sm:$0xff]
        %v293 = vld [vmem:[#allocation6 + $0xf0] sm:$0xff]
        %v294 = vld [vmem:[#allocation6 + $0xf8] sm:$0xff]
        %v295 = vld [vmem:[%s2] sm:$0x3]
        %v297 = vlaneseq
        %v298 = vshrl.u32 %v297, 7
        %v299 = vsub.s32 0, %v298
        %v300 = vrot.slane %v295, %v299
        %v301 = vlaneseq
        %v302 = vshrl.u32 %v301, 7
        %v303 = vsub.s32 1, %v302
        %v304 = vrot.slane %v295, %v303
        %v309 = vunpack.c.l.b16 %v261
        %v310 = vunpack.c.h.b16 %v261
        %v311 = vunpack.c.l.b16 %v262
        %v312 = vunpack.c.h.b16 %v262
        %v313 = vpack.c.b16 %v311, %v309
        %v314 = vpack.c.b16 %v312, %v310
        %v349 = vunpack.c.l.b16 %v263
        %v350 = vunpack.c.h.b16 %v263
        %v351 = vunpack.c.l.b16 %v264
        %v352 = vunpack.c.h.b16 %v264
        %v353 = vunpack.c.l.b16 %v265
        %v354 = vunpack.c.h.b16 %v265
        %v355 = vunpack.c.l.b16 %v266
        %v356 = vunpack.c.h.b16 %v266
        %v357 = vunpack.c.l.b16 %v267
        %v358 = vunpack.c.h.b16 %v267
        %v359 = vunpack.c.l.b16 %v268
        %v360 = vunpack.c.h.b16 %v268
        %v361 = vunpack.c.l.b16 %v269
        %v362 = vunpack.c.h.b16 %v269
        %v363 = vunpack.c.l.b16 %v270
        %v364 = vunpack.c.h.b16 %v270
        %v365 = vunpack.c.l.b16 %v271
        %v366 = vunpack.c.h.b16 %v271
        %v367 = vunpack.c.l.b16 %v272
        %v368 = vunpack.c.h.b16 %v272
        %v369 = vunpack.c.l.b16 %v273
        %v370 = vunpack.c.h.b16 %v273
        %v371 = vunpack.c.l.b16 %v274
        %v372 = vunpack.c.h.b16 %v274
        %v373 = vunpack.c.l.b16 %v275
        %v374 = vunpack.c.h.b16 %v275
        %v375 = vunpack.c.l.b16 %v276
        %v376 = vunpack.c.h.b16 %v276
        %v377 = vunpack.c.l.b16 %v277
        %v378 = vunpack.c.h.b16 %v277
        %v379 = vunpack.c.l.b16 %v278
        %v380 = vunpack.c.h.b16 %v278
        %v381 = vunpack.c.l.b16 %v279
        %v382 = vunpack.c.h.b16 %v279
        %v383 = vunpack.c.l.b16 %v280
        %v384 = vunpack.c.h.b16 %v280
        %v385 = vunpack.c.l.b16 %v281
        %v386 = vunpack.c.h.b16 %v281
        %v387 = vunpack.c.l.b16 %v282
        %v388 = vunpack.c.h.b16 %v282
        %v389 = vunpack.c.l.b16 %v283
        %v390 = vunpack.c.h.b16 %v283
        %v391 = vunpack.c.l.b16 %v284
        %v392 = vunpack.c.h.b16 %v284
        %v393 = vunpack.c.l.b16 %v285
        %v394 = vunpack.c.h.b16 %v285
        %v395 = vunpack.c.l.b16 %v286
        %v396 = vunpack.c.h.b16 %v286
        %v397 = vunpack.c.l.b16 %v287
        %v398 = vunpack.c.h.b16 %v287
        %v399 = vunpack.c.l.b16 %v288
        %v400 = vunpack.c.h.b16 %v288
        %v401 = vunpack.c.l.b16 %v289
        %v402 = vunpack.c.h.b16 %v289
        %v403 = vunpack.c.l.b16 %v290
        %v404 = vunpack.c.h.b16 %v290
        %v405 = vunpack.c.l.b16 %v291
        %v406 = vunpack.c.h.b16 %v291
        %v407 = vunpack.c.l.b16 %v292
        %v408 = vunpack.c.h.b16 %v292
        %v409 = vunpack.c.l.b16 %v293
        %v410 = vunpack.c.h.b16 %v293
        %v411 = vunpack.c.l.b16 %v294
        %v412 = vunpack.c.h.b16 %v294
        %v413 = vpack.c.b16 %v351, %v349
        %v414 = vpack.c.b16 %v352, %v350
        %v415 = vpack.c.b16 %v355, %v353
        %v416 = vpack.c.b16 %v356, %v354
        %v417 = vpack.c.b16 %v359, %v357
        %v418 = vpack.c.b16 %v360, %v358
        %v419 = vpack.c.b16 %v363, %v361
        %v420 = vpack.c.b16 %v364, %v362
        %v421 = vpack.c.b16 %v367, %v365
        %v422 = vpack.c.b16 %v368, %v366
        %v423 = vpack.c.b16 %v371, %v369
        %v424 = vpack.c.b16 %v372, %v370
        %v425 = vpack.c.b16 %v375, %v373
        %v426 = vpack.c.b16 %v376, %v374
        %v427 = vpack.c.b16 %v379, %v377
        %v428 = vpack.c.b16 %v380, %v378
        %v429 = vpack.c.b16 %v383, %v381
        %v430 = vpack.c.b16 %v384, %v382
        %v431 = vpack.c.b16 %v387, %v385
        %v432 = vpack.c.b16 %v388, %v386
        %v433 = vpack.c.b16 %v391, %v389
        %v434 = vpack.c.b16 %v392, %v390
        %v435 = vpack.c.b16 %v395, %v393
        %v436 = vpack.c.b16 %v396, %v394
        %v437 = vpack.c.b16 %v399, %v397
        %v438 = vpack.c.b16 %v400, %v398
        %v439 = vpack.c.b16 %v403, %v401
        %v440 = vpack.c.b16 %v404, %v402
        %v441 = vpack.c.b16 %v407, %v405
        %v442 = vpack.c.b16 %v408, %v406
        %v443 = vpack.c.b16 %v411, %v409
        %v444 = vpack.c.b16 %v412, %v410
        %477 = vmatprep.subr.bf16.mxu0 %v428
        %478 = vmatpush1.bf16.msra.mxu0 %v427
        %479 = vmatprep.subr.bf16.mxu0 %v426
        %480 = vmatpush1.bf16.msra.mxu0 %v425
        %481 = vmatprep.subr.bf16.mxu0 %v424
        %482 = vmatpush1.bf16.msra.mxu0 %v423
        %483 = vmatprep.subr.bf16.mxu0 %v422
        %484 = vmatpush1.bf16.msra.mxu0 %v421
        %485 = vmatprep.subr.bf16.mxu0 %v420
        %486 = vmatpush1.bf16.msra.mxu0 %v419
        %487 = vmatprep.subr.bf16.mxu0 %v418
        %488 = vmatpush1.bf16.msra.mxu0 %v417
        %489 = vmatprep.subr.bf16.mxu0 %v416
        %490 = vmatpush1.bf16.msra.mxu0 %v415
        %491 = vmatprep.subr.bf16.mxu0 %v414
        %492 = vmatpush1.bf16.msra.mxu0 %v413
        %493 = vmatprep.subr.bf16.mxu0 %v444
        %494 = vmatpush2.bf16.msra.mxu0 %v443
        %495 = vmatprep.subr.bf16.mxu0 %v442
        %496 = vmatpush2.bf16.msra.mxu0 %v441
        %497 = vmatprep.subr.bf16.mxu0 %v440
        %498 = vmatpush2.bf16.msra.mxu0 %v439
        %499 = vmatprep.subr.bf16.mxu0 %v438
        %500 = vmatpush2.bf16.msra.mxu0 %v437
        %501 = vmatprep.subr.bf16.mxu0 %v436
        %502 = vmatpush2.bf16.msra.mxu0 %v435
        %503 = vmatprep.subr.bf16.mxu0 %v434
        %504 = vmatpush2.bf16.msra.mxu0 %v433
        %505 = vmatprep.subr.bf16.mxu0 %v432
        %506 = vmatpush2.bf16.msra.mxu0 %v431
        %507 = vmatprep.subr.bf16.mxu0 %v430
        %508 = vmatpush2.bf16.msra.mxu0 %v429
        %509 = vmatprep.mubr.bf16.mxu0 %v314
        %510 = vmatmul.mubr.bf16.gmra.mxu0 %v313
        %v511 = vpop.f32.mrf.mxu0
        %v512 = vadd.f32 %v300, %v511
        %v513 = vpop.f32.mrf.mxu0
        %v514 = vadd.f32 %v304, %v513
        %v515 = vpop.f32.mrf.mxu0
        %v516 = vadd.f32 %v300, %v515
        %v517 = vpop.f32.mrf.mxu0
        %v518 = vadd.f32 %v304, %v517
        %519 = vdwg.mxu0
        %v520 = vtanh.pop %v512
        %v521 = vtanh.pop %v514
        %v522 = vtanh.pop %v516
        %v523 = vtanh.pop %v518
        %v524 = vld [vmem:[%s3] sm:$0x3]
        %v526 = vlaneseq
        %v527 = vshrl.u32 %v526, 7
        %v528 = vsub.s32 0, %v527
        %v529 = vrot.slane %v524, %v528
        %v530 = vlaneseq
        %v531 = vshrl.u32 %v530, 7
        %v532 = vsub.s32 1, %v531
        %v533 = vrot.slane %v524, %v532
        %v536 = vmul.f32 %v520, %v529
        %v537 = vmul.f32 %v521, %v533
        %v538 = vmul.f32 %v522, %v529
        %v539 = vmul.f32 %v523, %v533
        %v540 = vadd.f32 %v536, %v537
        %541 = vadd.xlane.f32.xlu0 %v540
        %v542 = vpop.xlane.xlu0 %541
        %v543 = vadd.f32 %v538, %v539
        %544 = vadd.xlane.f32.xlu0 %v543
        %v545 = vpop.xlane.xlu0 %544
        %s546 = sld [smem:[#allocation2]]
        %v547 = vstv %s546
        %v548 = vadd.f32 %v542, %v547
        %v549 = vadd.f32 %v545, %v547
        %v552 = vlaneseq
        %v553 = vand.u32 %v552, 127
        %v554 = vlaneseq
        %v555 = vshrl.u32 %v554, 7
        %v556 = vsub.s32 %v553, %v555
        %v557 = vrot.slane %v548, %v556
        %v558 = vadd.s32 %v553, 4294967288
        %v559 = vlaneseq
        %v560 = vshrl.u32 %v559, 7
        %v561 = vsub.s32 %v558, %v560
        %v562 = vrot.slane %v549, %v561
        %vm563 = vcmask 130112
        %v564 = vsel %vm563, %v562, %v557
        %vm565 = vcmask 1042434
        %v566 = vsel %vm565, %v564, %v564
        %vm567 = vcmask 1043459
        %v568 = vsel %vm567, %v564, %v566
        %vm569 = vcmask 1044484
        %v570 = vsel %vm569, %v564, %v568
        %vm571 = vcmask 1045509
        %v572 = vsel %vm571, %v564, %v570
        %vm573 = vcmask 1046534
        %v574 = vsel %vm573, %v564, %v572
        %vm575 = vcmask 1047559
        %v576 = vsel %vm575, %v564, %v574
        %vm578 = vcmask 130048
        %579 = vst.msk [vmem:[%s259] sm:$0xff] %vm578, %v576
        %s580 = sand.u32 %s142, 1
        %s581 = scalar_lea.sflag [#allocation5], %s580
        %s582 = sand.u32 %s142, 1
        %s583 = smul.addr %s582, 8
        %s584 = scalar_lea.vmem [#allocation8], %s583
        // Predicated region
        $region49: #{tpu_custom_call.1} parent=39 // pred_check
          %p585 = pneg %p152
        $region50: #{tpu_custom_call.1} parent=39 // pred_check_branch
          %587 = sbr.rel (%p585) target = $region52
        $region51: #{tpu_custom_call.1} parent=39 // pred_region
          %s589 = ssub.s32 128, 128
          %590 = vsyncadd %s581, %s589
          %s591 = smul.addr %s24, 128
          %s592 = scalar_lea.hbm %s5, %s591
          %s594 = sshll.u32 %s584, 4
          %s595 = int_to_ptr.vmem [resolvable:$true] %s594
          %597 = dma.vmem_to_hbm [thread:$0]  %s595, 128, %s592, %s581
        $region52: #{tpu_custom_call.1} parent=39 // pred_fallthru
          _
      $region40: #{tpu_custom_call.1} parent=5 // pred_fallthru
        _
      %p598 = scmp.le.s32.totalorder 2, %s19
      // Predicated region
      $region53: #{tpu_custom_call.1} parent=5 // pred_check
        %p599 = pneg %p598
      $region54: #{tpu_custom_call.1} parent=5 // pred_check_branch
        %601 = sbr.rel (%p599) target = $region56
      $region55: #{tpu_custom_call.1} parent=5 // pred_region
        %s602 = ssub.s32 %s19, 2
        // Predicated region
        $region57: #{tpu_custom_call.1} parent=55 // pred_check
          %p603 = pneg %p158
        $region58: #{tpu_custom_call.1} parent=55 // pred_check_branch
          %605 = sbr.rel (%p603) target = $region60
        $region59: #{tpu_custom_call.1} parent=55 // pred_region
          %s606 = sand.u32 %s143, 1
          %s607 = scalar_lea.sflag [#allocation5], %s606
          %s608 = sand.u32 %s143, 1
          %s609 = smul.addr %s608, 8
          %s610 = scalar_lea.vmem [#allocation8], %s609
          %611 = dma.done %s607, 128
        $region60: #{tpu_custom_call.1} parent=55 // pred_fallthru
          _
      $region56: #{tpu_custom_call.1} parent=5 // pred_fallthru
        _
    $region6: #{tpu_custom_call.1} parent=1 // loop_footer
      %s23 = sadd.s32 1, %s19
    $region7: #{tpu_custom_call.1} parent=1 // loop_footer_branch
      %18 = sbr.rel target = $region3
    $region8: #{tpu_custom_call.1} parent=1 // loop_exit
      _
    %612 = vsyncpa [#allocation4], 1
    %s613 = scalar_lea.sflag [#allocation4], 1
    %614 = vsyncpa %s613, 1
    %615 = vsyncpa [#allocation7], 1
    %616 = vsyncpa [#allocation5], 1
    %s617 = scalar_lea.sflag [#allocation5], 1
    %618 = vsyncpa %s617, 1

</llo_original>
